<compile_context>
chip_gen: v7x
topology: tpu7x:2x2x1
jax: 0.10.0
libtpu: 0.0.40
codegen_flags: <defaults>
</compile_context>

<pallas_src>
import math
from functools import partial

import jax
import jax.numpy as jnp
from jax import lax
from jax.experimental import pallas as pl
from jax.experimental.pallas import tpu as pltpu

BN_EPS = 1e-5


def _vmem_budget():
    cap = 64 * 1024 * 1024
    try:
        info = pltpu.get_tpu_info()
        cap = int(getattr(info, "vmem_capacity_bytes", cap))
    except Exception:
        pass
    return min(cap * 3 // 4, 96 * 1024 * 1024)


VMEM_LIMIT_BYTES = _vmem_budget()
BIG_VMEM = VMEM_LIMIT_BYTES >= 80 * 1024 * 1024
MM_TM = 1024 if BIG_VMEM else 512      # row tile for generic fused matmuls
PIX_TM = 4096 if BIG_VMEM else 2048    # row tile for pixel-major kernels
DW_TH = 64 if BIG_VMEM else 32         # dwconv strip height


def _round_up(x, m):
    return (x + m - 1) // m * m


def _tile_rows(m, target):
    """Row tile + padded extent; pads instead of single-full-block fallback."""
    if m <= target:
        return m, m
    return target, _round_up(m, target)


def _cp(sem):
    return pltpu.CompilerParams(dimension_semantics=sem,
                                vmem_limit_bytes=VMEM_LIMIT_BYTES)


def _gelu(x):
    # TODO(synk): PyTorch F.gelu defaults to the exact erf form; tanh-approximate
    # GELU is used in-kernel since erf has no guaranteed Mosaic lowering.
    return jax.nn.gelu(x, approximate=True)


# ----------------------------------------------------------------------------
# Generic 1x1-conv (matmul) + BN + activation
# ----------------------------------------------------------------------------
def _matmul_bn_act_kernel(x_ref, w_ref, scale_ref, shift_ref, o_ref, *, act,
                          pre_gelu):
    x = x_ref[...]
    if pre_gelu:
        x = _gelu(x.astype(jnp.float32))
    y = jnp.dot(x.astype(jnp.bfloat16), w_ref[...],
                preferred_element_type=jnp.float32)
    y = y * scale_ref[...] + shift_ref[...]
    if act == "gelu":
        y = _gelu(y)
    o_ref[...] = y.astype(o_ref.dtype)


def fused_matmul(x, w, scale, shift, act="none", pre_gelu=False,
                 out_dtype=jnp.float32):
    """act(BN(optional_gelu(x) @ w)); bf16 MXU operands, f32 accumulation."""
    M, K = x.shape
    N = w.shape[1]
    TM, Mp = _tile_rows(M, MM_TM)
    if Mp != M:
        x = jnp.pad(x, ((0, Mp - M), (0, 0)))
    out = pl.pallas_call(
        partial(_matmul_bn_act_kernel, act=act, pre_gelu=pre_gelu),
        grid=(Mp // TM,),
        in_specs=[
            pl.BlockSpec((TM, K), lambda i: (i, 0)),
            pl.BlockSpec((K, N), lambda i: (0, 0)),
            pl.BlockSpec((1, N), lambda i: (0, 0)),
            pl.BlockSpec((1, N), lambda i: (0, 0)),
        ],
        out_specs=pl.BlockSpec((TM, N), lambda i: (i, 0)),
        out_shape=jax.ShapeDtypeStruct((Mp, N), out_dtype),
        compiler_params=_cp(("parallel",)),
    )(x, w, scale.reshape(1, N), shift.reshape(1, N))
    return out if Mp == M else out[:M]


def conv2d_1x1(x_nhwc, p, act="none", pre_gelu=False, out_dtype=jnp.float32):
    B, H, W, C = x_nhwc.shape
    y = fused_matmul(x_nhwc.reshape(B * H * W, C), p["w"], p["scale"], p["shift"],
                     act=act, pre_gelu=pre_gelu, out_dtype=out_dtype)
    return y.reshape(B, H, W, -1)


def conv1d(q_blc, p, act="none", out_dtype=jnp.float32):
    B, L, C = q_blc.shape
    y = fused_matmul(q_blc.reshape(B * L, C), p["w"], p["scale"], p["shift"],
                     act=act, out_dtype=out_dtype)
    return y.reshape(B, L, -1)


# ----------------------------------------------------------------------------
# Depthwise 5x5 conv + BN + GELU (double-buffered halo-strip DMA, bf16 strips)
# ----------------------------------------------------------------------------
def _dwconv5x5_kernel(x_hbm, w_ref, scale_ref, shift_ref, o_ref, xbuf, sem):
    _, TH, W, C = o_ref.shape
    b = pl.program_id(0)
    h = pl.program_id(1)
    nH = pl.num_programs(1)

    def start_fetch(strip, slot):
        pltpu.make_async_copy(x_hbm.at[b, pl.ds(strip * TH, TH + 4)],
                              xbuf.at[slot], sem.at[slot]).start()

    @pl.when(h == 0)
    def _():
        start_fetch(0, 0)

    slot = h % 2
    pltpu.make_async_copy(x_hbm.at[b, pl.ds(h * TH, TH + 4)],
                          xbuf.at[slot], sem.at[slot]).wait()

    @pl.when(h + 1 < nH)
    def _():
        start_fetch(h + 1, 1 - slot)

    xs = xbuf.at[slot]
    w = w_ref[...]
    acc = jnp.zeros((TH, W, C), jnp.float32)
    for dy in range(5):
        for dx in range(5):
            acc = acc + (xs[pl.ds(dy, TH), pl.ds(dx, W), :].astype(jnp.float32)
                         * w[dy, dx, :])
    y = acc * scale_ref[...] + shift_ref[...]
    o_ref[...] = _gelu(y).astype(o_ref.dtype)[None]


def dwconv5x5_bn_gelu(x_nhwc, p):
    B, H, W, C = x_nhwc.shape
    TH = min(DW_TH, H)
    Hp = _round_up(H, TH)
    xp = jnp.pad(x_nhwc.astype(jnp.bfloat16),
                 ((0, 0), (2, 2 + Hp - H), (2, 2), (0, 0)))
    out = pl.pallas_call(
        _dwconv5x5_kernel,
        grid=(B, Hp // TH),
        in_specs=[
            pl.BlockSpec(memory_space=pl.ANY),            # padded image in HBM
            pl.BlockSpec((5, 5, C), lambda b, h: (0, 0, 0)),
            pl.BlockSpec((1, C), lambda b, h: (0, 0)),
            pl.BlockSpec((1, C), lambda b, h: (0, 0)),
        ],
        out_specs=pl.BlockSpec((1, TH, W, C), lambda b, h: (b, h, 0, 0)),
        out_shape=jax.ShapeDtypeStruct((B, Hp, W, C), jnp.bfloat16),
        scratch_shapes=[pltpu.VMEM((2, TH + 4, W + 4, C), jnp.bfloat16),
                        pltpu.SemaphoreType.DMA((2,))],
        compiler_params=_cp(("parallel", "arbitrary")),
    )(xp, p["w"], p["scale"].reshape(1, C), p["shift"].reshape(1, C))
    return out if Hp == H else out[:, :H]


# ----------------------------------------------------------------------------
# Predictor pixel head: conv1(+gelu) -> last conv(+bias BN) -> L2 norm, fused
# ----------------------------------------------------------------------------
def _pixel_head_kernel(x_ref, w1_ref, s1_ref, b1_ref, w2_ref, s2_ref, b2_ref,
                       o_ref):
    x = x_ref[...]                                        # (TM, cp) bf16
    h1 = jnp.dot(x.astype(jnp.bfloat16), w1_ref[...],
                 preferred_element_type=jnp.float32)
    h1 = _gelu(h1 * s1_ref[...] + b1_ref[...])
    h2 = jnp.dot(h1.astype(jnp.bfloat16), w2_ref[...],
                 preferred_element_type=jnp.float32)
    h2 = h2 * s2_ref[...] + b2_ref[...]
    ssum = jnp.sum(h2 * h2, axis=-1, keepdims=True)
    o_ref[...] = h2 * lax.rsqrt(jnp.maximum(ssum, 1e-24))   # F.normalize(p=2)


def pixel_head_fused(x_2d, p):
    M, cp = x_2d.shape
    hid = p["ps_conv1"]["w"].shape[1]
    emb = p["ps_last"]["w"].shape[1]
    TM, Mp = _tile_rows(M, PIX_TM)
    if Mp != M:
        x_2d = jnp.pad(x_2d, ((0, Mp - M), (0, 0)))
    out = pl.pallas_call(
        _pixel_head_kernel,
        grid=(Mp // TM,),
        in_specs=[
            pl.BlockSpec((TM, cp), lambda i: (i, 0)),
            pl.BlockSpec((cp, hid), lambda i: (0, 0)),
            pl.BlockSpec((1, hid), lambda i: (0, 0)),
            pl.BlockSpec((1, hid), lambda i: (0, 0)),
            pl.BlockSpec((hid, emb), lambda i: (0, 0)),
            pl.BlockSpec((1, emb), lambda i: (0, 0)),
            pl.BlockSpec((1, emb), lambda i: (0, 0)),
        ],
        out_specs=pl.BlockSpec((TM, emb), lambda i: (i, 0)),
        out_shape=jax.ShapeDtypeStruct((Mp, emb), jnp.float32),
        compiler_params=_cp(("parallel",)),
    )(x_2d, p["ps_conv1"]["w"], p["ps_conv1"]["scale"].reshape(1, hid),
      p["ps_conv1"]["shift"].reshape(1, hid), p["ps_last"]["w"],
      p["ps_last"]["scale"].reshape(1, emb), p["ps_last"]["shift"].reshape(1, emb))
    return out if Mp == M else out[:M]


# ----------------------------------------------------------------------------
# Mask logits (standalone, used only by the final predictor)
# ----------------------------------------------------------------------------
def _mask_logits_kernel(pix_ref, ker_ref, s_ref, b_ref, o_ref):
    pix = pix_ref[0].astype(jnp.bfloat16)                 # (TM, E)
    ker = ker_ref[0]                                      # (L, E) bf16
    ml = lax.dot_general(pix, ker, (((1,), (1,)), ((), ())),
                         preferred_element_type=jnp.float32)
    o_ref[...] = (ml * s_ref[0] + b_ref[0])[None]


def mask_logits_pallas(pix_bme, ker_ble, scale, shift):
    B, M, E = pix_bme.shape
    L = ker_ble.shape[1]
    TM, Mp = _tile_rows(M, PIX_TM)
    if Mp != M:
        pix_bme = jnp.pad(pix_bme, ((0, 0), (0, Mp - M), (0, 0)))
    out = pl.pallas_call(
        _mask_logits_kernel,
        grid=(B, Mp // TM),
        in_specs=[
            pl.BlockSpec((1, TM, E), lambda b, m: (b, m, 0)),
            pl.BlockSpec((1, L, E), lambda b, m: (b, 0, 0)),
            pl.BlockSpec(memory_space=pltpu.MemorySpace.SMEM),
            pl.BlockSpec(memory_space=pltpu.MemorySpace.SMEM),
        ],
        out_specs=pl.BlockSpec((1, TM, L), lambda b, m: (b, m, 0)),
        out_shape=jax.ShapeDtypeStruct((B, Mp, L), jnp.float32),
        compiler_params=_cp(("parallel", "parallel")),
    )(pix_bme, ker_ble, scale, shift)
    return out if Mp == M else out[:, :M]


# ----------------------------------------------------------------------------
# Fused mask-logits + hard k-means + retrieved-value BN + conv3 + residual
# ----------------------------------------------------------------------------
def _kmeans_kernel(pix_ref, ker_ref, ms_ref, mb_ref, pv_ref, ks_ref, kb_ref,
                   w3_ref, s3_ref, b3_ref, res_ref, ml_ref, q_ref, acc_ref):
    m = pl.program_id(1)

    @pl.when(m == 0)
    def _():
        acc_ref[...] = jnp.zeros_like(acc_ref)

    pix = pix_ref[0].astype(jnp.bfloat16)                 # (TM, E)
    ker = ker_ref[0]                                      # (L, E) bf16
    ml = lax.dot_general(pix, ker, (((1,), (1,)), ((), ())),
                         preferred_element_type=jnp.float32)       # (TM, L)
    ml = ml * ms_ref[0] + mb_ref[0]                       # pixel-space mask BN
    ml_ref[...] = ml[None]                                # logits written once

    L = ml.shape[1]
    mx = jnp.max(ml, axis=1, keepdims=True)
    iota = lax.broadcasted_iota(jnp.int32, ml.shape, 1)
    first = jnp.min(jnp.where(ml == mx, iota, L), axis=1, keepdims=True)
    onehot = (iota == first).astype(jnp.bfloat16)         # hard assignment
    acc_ref[...] += lax.dot_general(onehot, pv_ref[0],
                                    (((0,), (0,)), ((), ())),
                                    preferred_element_type=jnp.float32)  # (L,Dv)

    @pl.when(m == pl.num_programs(1) - 1)
    def _():
        km = acc_ref[...] * ks_ref[...] + kb_ref[...]     # k-means retrieved BN
        out = jnp.dot(km.astype(jnp.bfloat16), w3_ref[...],
                      preferred_element_type=jnp.float32)  # kmeans query_conv3
        q_ref[...] = (res_ref[0] + out * s3_ref[...] + b3_ref[...])[None]


def kmeans_fused(pix_bme, ker_ble, pv_bmd, q_res, p):
    B, M, E = pix_bme.shape
    L = ker_ble.shape[1]
    Dv = pv_bmd.shape[2]
    Dq = q_res.shape[2]
    TM, Mp = _tile_rows(M, PIX_TM)
    if Mp != M:
        pix_bme = jnp.pad(pix_bme, ((0, 0), (0, Mp - M), (0, 0)))
        pv_bmd = jnp.pad(pv_bmd, ((0, 0), (0, Mp - M), (0, 0)))
    pred = p["predictor"]
    ml, q_new = pl.pallas_call(
        _kmeans_kernel,
        grid=(B, Mp // TM),
        in_specs=[
            pl.BlockSpec((1, TM, E), lambda b, m: (b, m, 0)),
            pl.BlockSpec((1, L, E), lambda b, m: (b, 0, 0)),
            pl.BlockSpec(memory_space=pltpu.MemorySpace.SMEM),
            pl.BlockSpec(memory_space=pltpu.MemorySpace.SMEM),
            pl.BlockSpec((1, TM, Dv), lambda b, m: (b, m, 0)),
            pl.BlockSpec((1, Dv), lambda b, m: (0, 0)),
            pl.BlockSpec((1, Dv), lambda b, m: (0, 0)),
            pl.BlockSpec((Dv, Dq), lambda b, m: (0, 0)),
            pl.BlockSpec((1, Dq), lambda b, m: (0, 0)),
            pl.BlockSpec((1, Dq), lambda b, m: (0, 0)),
            pl.BlockSpec((1, L, Dq), lambda b, m: (b, 0, 0)),
        ],
        out_specs=(pl.BlockSpec((1, TM, L), lambda b, m: (b, m, 0)),
                   pl.BlockSpec((1, L, Dq), lambda b, m: (b, 0, 0))),
        out_shape=(jax.ShapeDtypeStruct((B, Mp, L), jnp.float32),
                   jax.ShapeDtypeStruct((B, L, Dq), jnp.float32)),
        scratch_shapes=[pltpu.VMEM((L, Dv), jnp.float32)],
        compiler_params=_cp(("parallel", "arbitrary")),
    )(pix_bme, ker_ble, pred["mask_bn_scale"], pred["mask_bn_shift"], pv_bmd,
      p["kmeans_bn_scale"], p["kmeans_bn_shift"], p["kmeans_w3"],
      p["kmeans_scale3"], p["kmeans_shift3"], q_res)
    if Mp != M:
        ml = ml[:, :M]
    return q_new, ml


# ----------------------------------------------------------------------------
# Query self-attention (heads merged for conv3) + residual + GELU, fused
# ----------------------------------------------------------------------------
def _attention_kernel(q_ref, k_ref, v_ref, ss_ref, sb_ref, vs_ref, vb_ref,
                      w3_ref, s3_ref, b3_ref, res_ref, o_ref, mbuf):
    ss = ss_ref[...]                                      # (h,1,1) per-head BN
    q = (q_ref[0].astype(jnp.float32) * ss).astype(jnp.bfloat16)
    k = k_ref[0]
    v = v_ref[0]
    sim = lax.dot_general(q, k, (((2,), (2,)), ((0,), (0,))),
                          preferred_element_type=jnp.float32)      # (h, L, L)
    sim = sim + sb_ref[...]
    sim = sim - jnp.max(sim, axis=-1, keepdims=True)
    e = jnp.exp(sim)
    p = e * pl.reciprocal(jnp.sum(e, axis=-1, keepdims=True), approx=True)
    ret = lax.dot_general(p.astype(jnp.bfloat16), v,
                          (((2,), (1,)), ((0,), (0,))),
                          preferred_element_type=jnp.float32)      # (h, L, dvh)
    ret = _gelu(ret * vs_ref[...] + vb_ref[...])          # retrieved-value BN
    heads, _, dvh = ret.shape
    for i in range(heads):                                # merge heads -> (L, vd)
        mbuf[:, i * dvh:(i + 1) * dvh] = ret[i]
    out = jnp.dot(mbuf[...].astype(jnp.bfloat16), w3_ref[...],
                  preferred_element_type=jnp.float32)     # single K=vd conv3
    out = out * s3_ref[...] + b3_ref[...]
    o_ref[...] = _gelu(res_ref[0] + out)[None]


def attention_fused(q, k, v, q_res, p):
    B, heads, L, dk = q.shape
    dvh = v.shape[3]
    vd = heads * dvh
    Dq = q_res.shape[2]
    return pl.pallas_call(
        _attention_kernel,
        grid=(B,),
        in_specs=[
            pl.BlockSpec((1, heads, L, dk), lambda b: (b, 0, 0, 0)),
            pl.BlockSpec((1, heads, L, dk), lambda b: (b, 0, 0, 0)),
            pl.BlockSpec((1, heads, L, dvh), lambda b: (b, 0, 0, 0)),
            pl.BlockSpec((heads, 1, 1), lambda b: (0, 0, 0)),
            pl.BlockSpec((heads, 1, 1), lambda b: (0, 0, 0)),
            pl.BlockSpec((heads, 1, dvh), lambda b: (0, 0, 0)),
            pl.BlockSpec((heads, 1, dvh), lambda b: (0, 0, 0)),
            pl.BlockSpec((vd, Dq), lambda b: (0, 0)),
            pl.BlockSpec((1, Dq), lambda b: (0, 0)),
            pl.BlockSpec((1, Dq), lambda b: (0, 0)),
            pl.BlockSpec((1, L, Dq), lambda b: (b, 0, 0)),
        ],
        out_specs=pl.BlockSpec((1, L, Dq), lambda b: (b, 0, 0)),
        out_shape=jax.ShapeDtypeStruct((B, L, Dq), jnp.float32),
        scratch_shapes=[pltpu.VMEM((L, vd), jnp.float32)],
        compiler_params=_cp(("parallel",)),
    )(q, k, v, p["sim_scale"], p["sim_shift"], p["val_scale"], p["val_shift"],
      p["attn_w3"], p["attn_scale3"], p["attn_shift3"], q_res)


# ----------------------------------------------------------------------------
# Fused tiny query-path kernels: (query_conv1 -> query_qkv) and (ffn1 -> ffn2)
# ----------------------------------------------------------------------------
def _query1_qkv_kernel(x_ref, w1, s1, b1, wq, sq, bq, qs_ref, qkv_ref):
    x = x_ref[...].astype(jnp.bfloat16)
    qs = jnp.dot(x, w1[...], preferred_element_type=jnp.float32)
    qs = _gelu(qs * s1[...] + b1[...])
    qs_ref[...] = qs.astype(qs_ref.dtype)
    qkv = jnp.dot(qs.astype(jnp.bfloat16), wq[...],
                  preferred_element_type=jnp.float32)
    qkv_ref[...] = (qkv * sq[...] + bq[...]).astype(qkv_ref.dtype)


def query1_qkv_fused(query_blc, p):
    B, L, Dq = query_blc.shape
    bott = p["query_conv1"]["w"].shape[1]
    qd = p["query_qkv"]["w"].shape[1]
    M = B * L
    qs, qkv = pl.pallas_call(
        _query1_qkv_kernel,
        grid=(1,),
        in_specs=[pl.BlockSpec((M, Dq), lambda i: (0, 0)),
                  pl.BlockSpec((Dq, bott), lambda i: (0, 0)),
                  pl.BlockSpec((1, bott), lambda i: (0, 0)),
                  pl.BlockSpec((1, bott), lambda i: (0, 0)),
                  pl.BlockSpec((bott, qd), lambda i: (0, 0)),
                  pl.BlockSpec((1, qd), lambda i: (0, 0)),
                  pl.BlockSpec((1, qd), lambda i: (0, 0))],
        out_specs=(pl.BlockSpec((M, bott), lambda i: (0, 0)),
                   pl.BlockSpec((M, qd), lambda i: (0, 0))),
        out_shape=(jax.ShapeDtypeStruct((M, bott), jnp.bfloat16),
                   jax.ShapeDtypeStruct((M, qd), jnp.bfloat16)),
        compiler_params=_cp(("arbitrary",)),
    )(query_blc.reshape(M, Dq), p["query_conv1"]["w"],
      p["query_conv1"]["scale"].reshape(1, bott),
      p["query_conv1"]["shift"].reshape(1, bott), p["query_qkv"]["w"],
      p["query_qkv"]["scale"].reshape(1, qd), p["query_qkv"]["shift"].reshape(1, qd))
    return qs.reshape(B, L, bott), qkv.reshape(B, L, qd)


def _ffn_kernel(x_ref, w1, s1, b1, w2, s2, b2, o_ref):
    x = x_ref[...]
    f = jnp.dot(x.astype(jnp.bfloat16), w1[...], preferred_element_type=jnp.float32)
    f = _gelu(f * s1[...] + b1[...])
    f = jnp.dot(f.astype(jnp.bfloat16), w2[...], preferred_element_type=jnp.float32)
    f = f * s2[...] + b2[...]
    o_ref[...] = _gelu(x + f)


def ffn_fused(query_blc, p):
    B, L, Dq = query_blc.shape
    F = p["ffn1"]["w"].shape[1]
    M = B * L
    out = pl.pallas_call(
        _ffn_kernel,
        grid=(1,),
        in_specs=[pl.BlockSpec((M, Dq), lambda i: (0, 0)),
                  pl.BlockSpec((Dq, F), lambda i: (0, 0)),
                  pl.BlockSpec((1, F), lambda i: (0, 0)),
                  pl.BlockSpec((1, F), lambda i: (0, 0)),
                  pl.BlockSpec((F, Dq), lambda i: (0, 0)),
                  pl.BlockSpec((1, Dq), lambda i: (0, 0)),
                  pl.BlockSpec((1, Dq), lambda i: (0, 0))],
        out_specs=pl.BlockSpec((M, Dq), lambda i: (0, 0)),
        out_shape=jax.ShapeDtypeStruct((M, Dq), jnp.float32),
        compiler_params=_cp(("arbitrary",)),
    )(query_blc.reshape(M, Dq), p["ffn1"]["w"],
      p["ffn1"]["scale"].reshape(1, F), p["ffn1"]["shift"].reshape(1, F),
      p["ffn2"]["w"], p["ffn2"]["scale"].reshape(1, Dq),
      p["ffn2"]["shift"].reshape(1, Dq))
    return out.reshape(B, L, Dq)


# ----------------------------------------------------------------------------
# Parameter construction (deterministic, from module __init__ shapes)
# ----------------------------------------------------------------------------
class ParamGen:
    def __init__(self, key):
        self._key = key
        self._i = 0

    def normal(self, shape, std=0.02):
        self._i += 1
        return std * jax.random.normal(jax.random.fold_in(self._key, self._i),
                                       shape, jnp.float32)


def make_bn_affine(c, init=1.0):
    gamma = jnp.full((c,), init, jnp.float32)
    scale = gamma / jnp.sqrt(1.0 + BN_EPS)        # running var=1, mean=0
    shift = jnp.zeros((c,), jnp.float32)
    return scale, shift


def make_convbn_params(pg, cin, cout, *, bias=False, norm=True, norm_init=1.0,
                       std=0.02):
    w = pg.normal((cin, cout), std).astype(jnp.bfloat16)    # bf16 MXU operand
    b = pg.normal((cout,), std) if bias else jnp.zeros((cout,), jnp.float32)
    if norm:
        gamma = jnp.full((cout,), norm_init, jnp.float32)
        scale = gamma / jnp.sqrt(1.0 + BN_EPS)
        shift = b * scale                          # beta=0, running mean=0
    else:
        scale = jnp.ones((cout,), jnp.float32)
        shift = b
    return {"w": w, "scale": scale, "shift": shift}


def make_predictor_params(pg, cp, cq, ncls, hidden, embed):
    dw_scale, dw_shift = make_bn_affine(cp)
    mb_scale, mb_shift = make_bn_affine(1, init=0.1)   # _pixel_space_mask_batch_norm
    return {
        "ps_conv0": {"w": pg.normal((5, 5, cp)), "scale": dw_scale, "shift": dw_shift},
        "ps_conv1": make_convbn_params(pg, cp, hidden),
        "ps_last": make_convbn_params(pg, hidden, embed, bias=True, std=0.01),
        "class_head": make_convbn_params(pg, cq, ncls, bias=True, norm=False, std=0.01),
        "mask_head": make_convbn_params(pg, cq, embed),
        "mask_bn_scale": mb_scale,      # (1,) -> SMEM scalar
        "mask_bn_shift": mb_shift,
    }


def make_layer_params(pg, cp_in, cfg):
    Dq = cfg["query_dim"]
    heads = cfg["num_heads"]
    base = cfg["base_filters"]
    bott, kd, vd = 2 * base, base, 2 * base
    dvh = vd // heads
    std0 = bott ** -0.5
    ncls = cfg["num_classes"] + 1
    sim_s, sim_b = make_bn_affine(heads)
    val_s, val_b = make_bn_affine(vd)
    km_s, km_b = make_bn_affine(vd)
    qc3 = make_convbn_params(pg, vd, Dq, norm_init=0.0)
    kc3 = make_convbn_params(pg, vd, Dq, norm_init=0.0)
    return {
        "query_conv1": make_convbn_params(pg, Dq, bott),
        "pixel_conv1": make_convbn_params(pg, cp_in, bott),
        "query_qkv": make_convbn_params(pg, bott, 2 * kd + vd, std=std0),
        "pixel_v": make_convbn_params(pg, bott, vd, std=std0),
        "sim_scale": sim_s.reshape(heads, 1, 1),
        "sim_shift": sim_b.reshape(heads, 1, 1),
        "val_scale": val_s.reshape(heads, 1, dvh),
        "val_shift": val_b.reshape(heads, 1, dvh),
        "attn_w3": qc3["w"],                       # (vd, Dq) heads merged
        "attn_scale3": qc3["scale"].reshape(1, Dq),
        "attn_shift3": qc3["shift"].reshape(1, Dq),
        "ffn1": make_convbn_params(pg, Dq, cfg["ffn_dim"]),
        "ffn2": make_convbn_params(pg, cfg["ffn_dim"], Dq, norm_init=0.0),
        "predictor": make_predictor_params(pg, bott, bott, ncls,
                                           cfg["pred_hidden"], cfg["pred_embed"]),
        "kmeans_bn_scale": km_s.reshape(1, vd),
        "kmeans_bn_shift": km_b.reshape(1, vd),
        "kmeans_w3": kc3["w"],
        "kmeans_scale3": kc3["scale"].reshape(1, Dq),
        "kmeans_shift3": kc3["shift"].reshape(1, Dq),
    }


def make_decoder_params(key, cfg):
    pg = ParamGen(key)
    Dq, L = cfg["query_dim"], cfg["num_queries"]
    ncls = cfg["num_classes"] + 1
    params = {
        "cluster_centers": pg.normal((Dq, L), std=1.0),   # nn.Embedding(256, L).weight
        "void_bias": jnp.zeros((ncls,), jnp.float32).at[-1].set(
            math.log((ncls - 1) * 0.9 / (1.0 - 0.9))),
        "layers": [],
        "class_proj": make_convbn_params(pg, Dq, Dq),
        "mask_proj": make_convbn_params(pg, Dq, Dq),
        "predictor": make_predictor_params(pg, cfg["in_channels"][-1], Dq, ncls,
                                           cfg["pred_hidden"], cfg["pred_embed"]),
    }
    for i in range(3):                                    # output strides 32, 16, 8
        for _ in range(cfg["dec_layers"][i]):
            params["layers"].append(make_layer_params(pg, cfg["in_channels"][i], cfg))
    return params


# ----------------------------------------------------------------------------
# Module forward passes
# ----------------------------------------------------------------------------
def kmax_predictor_final(p, mask_emb, class_emb, pixel_nhwc, void_bias):
    dw = dwconv5x5_bn_gelu(pixel_nhwc, p["ps_conv0"])
    B, H, W, cp = dw.shape
    Pe = p["ps_last"]["w"].shape[1]
    pix_norm = pixel_head_fused(dw.reshape(B * H * W, cp), p)
    cls_logits = conv1d(class_emb, p["class_head"]) + void_bias   # add_bias_towards_void
    mask_kernel = conv1d(mask_emb, p["mask_head"], out_dtype=jnp.bfloat16)
    L = mask_kernel.shape[1]
    ml = mask_logits_pallas(pix_norm.reshape(B, H * W, Pe), mask_kernel,
                            p["mask_bn_scale"], p["mask_bn_shift"])
    return {"class_logits": cls_logits,
            "mask_logits_hwl": ml.reshape(B, H, W, L),
            "pixel_feature": pix_norm.reshape(B, H, W, Pe)}


def kmax_layer(p, pixel_nhwc, query_blc, cfg, void_bias):
    B, H, W, _ = pixel_nhwc.shape
    L = query_blc.shape[1]
    heads = cfg["num_heads"]
    kd = cfg["base_filters"]

    # bottleneck projections (bf16 activations between kernels)
    pixel_space = conv2d_1x1(pixel_nhwc, p["pixel_conv1"], act="gelu",
                             pre_gelu=True, out_dtype=jnp.bfloat16)
    query_space, qkv = query1_qkv_fused(query_blc, p)
    pixel_value = conv2d_1x1(pixel_space, p["pixel_v"], out_dtype=jnp.bfloat16)
    Dv = pixel_value.shape[-1]

    # predictor: dwconv5x5 -> fused pixel head (conv1+last+l2norm)
    pred_p = p["predictor"]
    dw = dwconv5x5_bn_gelu(pixel_space, pred_p["ps_conv0"])
    Pe = pred_p["ps_last"]["w"].shape[1]
    pix_norm = pixel_head_fused(dw.reshape(B * H * W, -1), pred_p)
    cls_logits = conv1d(query_space, pred_p["class_head"]) + void_bias
    mask_kernel = conv1d(query_space, pred_p["mask_head"], out_dtype=jnp.bfloat16)

    # fused mask-logits + hard k-means + BN + query_conv3 + residual
    query, mask_logits = kmeans_fused(pix_norm.reshape(B, H * W, Pe), mask_kernel,
                                      pixel_value.reshape(B, H * W, Dv),
                                      query_blc, p)        # drop_path = identity

    # query self attention (heads batched; conv3+residual+gelu fused in kernel)
    kdh, dvh = kd // heads, Dv // heads
    q = qkv[..., :kd].reshape(B, L, heads, kdh).transpose(0, 2, 1, 3)
    k = qkv[..., kd:2 * kd].reshape(B, L, heads, kdh).transpose(0, 2, 1, 3)
    v = qkv[..., 2 * kd:].reshape(B, L, heads, dvh).transpose(0, 2, 1, 3)
    query = attention_fused(q, k, v, query, p)

    # FFN (two matmuls + residual + gelu in one kernel)
    query = ffn_fused(query, p)

    pred = {"class_logits": cls_logits,
            "mask_logits_hwl": mask_logits.reshape(B, H, W, L),
            "pixel_feature": pix_norm.reshape(B, H, W, Pe)}
    return query, pred


def kmax_decoder_forward(params, x_list_nchw, panoptic_nchw, cfg,
                         semantic_features=None):
    # TODO(synk): auxiliary semantic predictor (ASPP / SemanticPredictor) is a
    # training-only branch (`self.training`); this is the eval forward pass.
    B = x_list_nchw[0].shape[0]
    L, Dq = cfg["num_queries"], cfg["query_dim"]
    query = jnp.broadcast_to(params["cluster_centers"].T[None], (B, L, Dq))

    preds_class, preds_mask_hwl, preds_pix = [], [], []
    li = 0
    for i, feat in enumerate(x_list_nchw):
        feat_nhwc = jnp.transpose(feat, (0, 2, 3, 1))
        for _ in range(cfg["dec_layers"][i]):
            query, pred = kmax_layer(params["layers"][li], feat_nhwc, query, cfg,
                                     params["void_bias"])
            preds_class.append(pred["class_logits"])
            preds_mask_hwl.append(pred["mask_logits_hwl"])
            preds_pix.append(pred["pixel_feature"])
            li += 1

    class_emb = conv1d(query, params["class_proj"], act="gelu",
                       out_dtype=jnp.bfloat16)
    mask_emb = conv1d(query, params["mask_proj"], act="gelu",
                      out_dtype=jnp.bfloat16)
    pred = kmax_predictor_final(params["predictor"], mask_emb, class_emb,
                                jnp.transpose(panoptic_nchw, (0, 2, 3, 1)),
                                params["void_bias"])
    preds_class.append(pred["class_logits"])
    preds_mask_hwl.append(pred["mask_logits_hwl"])
    preds_pix.append(pred["pixel_feature"])

    Ht, Wt = preds_mask_hwl[-1].shape[1:3]
    aux = []
    for a, b_hwl, c_hwc in zip(preds_class[:-1], preds_mask_hwl[:-1], preds_pix[:-1]):
        b_r = jax.image.resize(b_hwl, (b_hwl.shape[0], Ht, Wt, b_hwl.shape[3]),
                               method="bilinear")
        c_r = jax.image.resize(c_hwc, (c_hwc.shape[0], Ht, Wt, c_hwc.shape[3]),
                               method="bilinear")
        aux.append({"pred_logits": a,
                    "pred_masks": jnp.transpose(b_r, (0, 3, 1, 2)),
                    "pixel_feature": jnp.transpose(c_r, (0, 3, 1, 2))})

    return {"pred_logits": preds_class[-1],
            "pred_masks": jnp.transpose(preds_mask_hwl[-1], (0, 3, 1, 2)),
            "pixel_feature": jnp.transpose(preds_pix[-1], (0, 3, 1, 2)),
            "aux_outputs": aux}


# ----------------------------------------------------------------------------
if __name__ == "__main__":
    CFG = dict(
        num_classes=10,      # torch: cfg NUM_CLASSES (class heads output K+1)
        num_queries=8,
        query_dim=32,        # torch hardcodes 256
        base_filters=16,     # torch hardcodes 128 -> bottleneck 32, key 16, value 32
        num_heads=4,         # torch hardcodes 8
        ffn_dim=64,          # torch hardcodes 2048
        pred_hidden=32,      # torch hardcodes 256
        pred_embed=16,       # torch hardcodes 128
        dec_layers=[1, 1, 1],
        in_channels=[16, 12, 8],
    )

    key = jax.random.PRNGKey(0)
    k1, k2, k3, k4 = jax.random.split(key, 4)
    B = 2
    # PyTorch-convention NCHW inputs: OS32, OS16, OS8 features + panoptic feature
    x = [
        jax.random.normal(k1, (B, CFG["in_channels"][0], 4, 4), jnp.float32),
        jax.random.normal(k2, (B, CFG["in_channels"][1], 8, 8), jnp.float32),
        jax.random.normal(k3, (B, CFG["in_channels"][2], 16, 16), jnp.float32),
    ]
    panoptic_features = jax.random.normal(
        k4, (B, CFG["in_channels"][-1], 16, 16), jnp.float32)

    params = make_decoder_params(jax.random.PRNGKey(42), CFG)

    out = kmax_decoder_forward(params, x, panoptic_features, CFG)
    jax.block_until_ready(out["pred_logits"])
    jax.block_until_ready(out["pred_masks"])
    jax.block_until_ready(out["pixel_feature"])
    for a in out["aux_outputs"]:
        jax.block_until_ready(a["pred_masks"])

    assert out["pred_logits"].shape == (B, CFG["num_queries"], CFG["num_classes"] + 1)
    assert out["pred_masks"].shape == (B, CFG["num_queries"], 16, 16)
    assert out["pixel_feature"].shape == (B, CFG["pred_embed"], 16, 16)
    assert len(out["aux_outputs"]) == sum(CFG["dec_layers"])
    print("KERNEL_OK")
</pallas_src>

<mosaic_0001>
module attributes {stable_mosaic.version = 11 : i64} {
  func.func @_matmul_bn_act_kernel(%arg0: i32, %arg1: memref<32x16xf32, #tpu.memory_space<vmem>>, %arg2: memref<16x32xbf16, #tpu.memory_space<vmem>>, %arg3: memref<1x32xf32, #tpu.memory_space<vmem>>, %arg4: memref<1x32xf32, #tpu.memory_space<vmem>>, %arg5: memref<32x32xbf16, #tpu.memory_space<vmem>>) attributes {dimension_semantics = [#tpu.dimension_semantics<parallel>], iteration_bounds = array<i64: 1>, scalar_prefetch = 0 : i64, scratch_operands = 0 : i64, tpu.core_type = #tpu.core_type<tc>, window_params = [{transform_indices = @transform_0, window_bounds = array<i64: 32, 16>}, {pipeline_mode = #tpu.pipeline_mode<synchronous>, transform_indices = @transform_1, window_bounds = array<i64: 16, 32>}, {pipeline_mode = #tpu.pipeline_mode<synchronous>, transform_indices = @transform_2, window_bounds = array<i64: 1, 32>}, {pipeline_mode = #tpu.pipeline_mode<synchronous>, transform_indices = @transform_3, window_bounds = array<i64: 1, 32>}, {transform_indices = @transform_4, window_bounds = array<i64: 32, 32>}]} {
    %c0 = arith.constant 0 : index
    %c0_0 = arith.constant 0 : index
    %0 = vector.load %arg1[%c0, %c0_0] : memref<32x16xf32, #tpu.memory_space<vmem>>, vector<32x16xf32>
    %1 = arith.mulf %0, %0 : vector<32x16xf32>
    %2 = arith.mulf %0, %1 : vector<32x16xf32>
    %cst = arith.constant 4.471500e-02 : f32
    %3 = vector.broadcast %cst : f32 to vector<32x16xf32>
    %4 = arith.mulf %3, %2 : vector<32x16xf32>
    %5 = arith.addf %0, %4 : vector<32x16xf32>
    %cst_1 = arith.constant 0.797884583 : f32
    %6 = vector.broadcast %cst_1 : f32 to vector<32x16xf32>
    %7 = arith.mulf %6, %5 : vector<32x16xf32>
    %8 = math.tanh %7 : vector<32x16xf32>
    %cst_2 = arith.constant 1.000000e+00 : f32
    %9 = vector.broadcast %cst_2 : f32 to vector<32x16xf32>
    %10 = arith.addf %9, %8 : vector<32x16xf32>
    %cst_3 = arith.constant 5.000000e-01 : f32
    %11 = vector.broadcast %cst_3 : f32 to vector<32x16xf32>
    %12 = arith.mulf %11, %10 : vector<32x16xf32>
    %13 = arith.mulf %0, %12 : vector<32x16xf32>
    %14 = arith.truncf %13 : vector<32x16xf32> to vector<32x16xbf16>
    %c0_4 = arith.constant 0 : index
    %c0_5 = arith.constant 0 : index
    %15 = vector.load %arg2[%c0_4, %c0_5] : memref<16x32xbf16, #tpu.memory_space<vmem>>, vector<16x32xbf16>
    %cst_6 = arith.constant dense<0.000000e+00> : vector<32x32xf32>
    %16 = tpu.matmul %14, %15, %cst_6 {dimension_numbers = #tpu.dot_dimension_numbers<[1], [0], [0], [1], [0, 0, 1, 1], [], []>} : vector<32x16xbf16>, vector<16x32xbf16>, vector<32x32xf32> -> vector<32x32xf32>
    %c0_7 = arith.constant 0 : index
    %c0_8 = arith.constant 0 : index
    %17 = vector.load %arg3[%c0_7, %c0_8] : memref<1x32xf32, #tpu.memory_space<vmem>>, vector<1x32xf32>
    %18 = vector.broadcast %17 : vector<1x32xf32> to vector<32x32xf32>
    %19 = arith.mulf %16, %18 : vector<32x32xf32>
    %c0_9 = arith.constant 0 : index
    %c0_10 = arith.constant 0 : index
    %20 = vector.load %arg4[%c0_9, %c0_10] : memref<1x32xf32, #tpu.memory_space<vmem>>, vector<1x32xf32>
    %21 = vector.broadcast %20 : vector<1x32xf32> to vector<32x32xf32>
    %22 = arith.addf %19, %21 : vector<32x32xf32>
    %23 = arith.mulf %22, %22 : vector<32x32xf32>
    %24 = arith.mulf %22, %23 : vector<32x32xf32>
    %cst_11 = arith.constant 4.471500e-02 : f32
    %25 = vector.broadcast %cst_11 : f32 to vector<32x32xf32>
    %26 = arith.mulf %25, %24 : vector<32x32xf32>
    %27 = arith.addf %22, %26 : vector<32x32xf32>
    %cst_12 = arith.constant 0.797884583 : f32
    %28 = vector.broadcast %cst_12 : f32 to vector<32x32xf32>
    %29 = arith.mulf %28, %27 : vector<32x32xf32>
    %30 = math.tanh %29 : vector<32x32xf32>
    %cst_13 = arith.constant 1.000000e+00 : f32
    %31 = vector.broadcast %cst_13 : f32 to vector<32x32xf32>
    %32 = arith.addf %31, %30 : vector<32x32xf32>
    %cst_14 = arith.constant 5.000000e-01 : f32
    %33 = vector.broadcast %cst_14 : f32 to vector<32x32xf32>
    %34 = arith.mulf %33, %32 : vector<32x32xf32>
    %35 = arith.mulf %22, %34 : vector<32x32xf32>
    %36 = arith.truncf %35 : vector<32x32xf32> to vector<32x32xbf16>
    %c0_15 = arith.constant 0 : index
    %c0_16 = arith.constant 0 : index
    %37 = vector.load %arg5[%c0_15, %c0_16] : memref<32x32xbf16, #tpu.memory_space<vmem>>, vector<32x32xbf16>
    tpu.vector_store %arg5[%c0_15, %c0_16], %36 {strides = array<i32>} : memref<32x32xbf16, #tpu.memory_space<vmem>>, vector<32x32xbf16>,
    return
  }
  func.func @transform_0(%arg0: i32) -> (i32, i32) {
    %c0_i32 = arith.constant 0 : i32
    %c0_i32_0 = arith.constant 0 : i32
    return %arg0, %c0_i32 : i32, i32
  }
  func.func @transform_1(%arg0: i32) -> (i32, i32) {
    %c0_i32 = arith.constant 0 : i32
    %c0_i32_0 = arith.constant 0 : i32
    %c0_i32_1 = arith.constant 0 : i32
    return %c0_i32, %c0_i32_0 : i32, i32
  }
  func.func @transform_2(%arg0: i32) -> (i32, i32) {
    %c0_i32 = arith.constant 0 : i32
    %c0_i32_0 = arith.constant 0 : i32
    %c0_i32_1 = arith.constant 0 : i32
    return %c0_i32, %c0_i32_0 : i32, i32
  }
  func.func @transform_3(%arg0: i32) -> (i32, i32) {
    %c0_i32 = arith.constant 0 : i32
    %c0_i32_0 = arith.constant 0 : i32
    %c0_i32_1 = arith.constant 0 : i32
    return %c0_i32, %c0_i32_0 : i32, i32
  }
  func.func @transform_4(%arg0: i32) -> (i32, i32) {
    %c0_i32 = arith.constant 0 : i32
    %c0_i32_0 = arith.constant 0 : i32
    return %arg0, %c0_i32 : i32, i32
  }
}

</mosaic_0001>

<llo_original>
// kernel: tpu_custom_call.1
$region0: #{tpu_custom_call.1}
  #allocation0 [shape = 'u32[]', space=smem, size = 0x4, offset = 0x4, fixed_abs, tag = 'smem constant byte address 0x4 - core index']
  #allocation1 [shape = 'u32[144,128]{1,0:T(1,128)}', space=vmem, size = 0x12000, scoped, tag = 'internal scratch']
  %s0 = inlined_call_operand.vmem [shape: f32[32,16], index: 0, kind: input, shape index: {}]
  %s1 = inlined_call_operand.vmem [shape: bf16[16,32], index: 1, kind: input, shape index: {}]
  %s2 = inlined_call_operand.vmem [shape: f32[1,32], index: 2, kind: input, shape index: {}]
  %s3 = inlined_call_operand.vmem [shape: f32[1,32], index: 3, kind: input, shape index: {}]
  %s4 = inlined_call_operand.hbm [shape: bf16[32,32], index: 4, kind: output, shape index: {}]
  %s5 = sld [smem:[#allocation0]]
  $region26: #{tpu_custom_call.1} parent=0
    _
  %s7 = ssub.s32 1, %s5
  %s8 = scalar_select 0, %s7, %s5
  $region1: #{tpu_custom_call.1} parent=0
    #allocation2 [shape = 'u8[8192]{0}', space=vmem, size = 0x2000, scoped, tag = 'output window, operand 0, single buffered']
    #allocation3 [shape = 's32[1]{0}', space=sflag, size = 0x4, scoped, tag = 'scoped memory for tpu_custom_call.1']
    %9 = vsyncpa [#allocation3], 0
    // Predicated region
    $region2: #{tpu_custom_call.1} parent=1 // pred_check
      _
    $region3: #{tpu_custom_call.1} parent=1 // pred_check_branch
      %11 = sbr.rel (0) target = $region5
    $region4: #{tpu_custom_call.1} parent=1 // pred_region
      _
    $region5: #{tpu_custom_call.1} parent=1 // pred_fallthru
      _
    // Predicated region
    $region6: #{tpu_custom_call.1} parent=1 // pred_check
      _
    $region7: #{tpu_custom_call.1} parent=1 // pred_check_branch
      %13 = sbr.rel (0) target = $region9
    $region8: #{tpu_custom_call.1} parent=1 // pred_region
      _
    $region9: #{tpu_custom_call.1} parent=1 // pred_fallthru
      _
    // Predicated region
    $region10: #{tpu_custom_call.1} parent=1 // pred_check
      _
    $region11: #{tpu_custom_call.1} parent=1 // pred_check_branch
      %15 = sbr.rel (0) target = $region13
    $region12: #{tpu_custom_call.1} parent=1 // pred_region
      _
    $region13: #{tpu_custom_call.1} parent=1 // pred_fallthru
      _
    // Predicated region
    $region14: #{tpu_custom_call.1} parent=1 // pred_check
      _
    $region15: #{tpu_custom_call.1} parent=1 // pred_check_branch
      %17 = sbr.rel (0) target = $region17
    $region16: #{tpu_custom_call.1} parent=1 // pred_region
      _
    $region17: #{tpu_custom_call.1} parent=1 // pred_fallthru
      _
    %v19 = vld [vmem:[%s0] sm:$0xff]
    %v20 = vld [vmem:[%s0 + $0x8] sm:$0xff]
    %v21 = vld [vmem:[%s0 + $0x10] sm:$0xff]
    %v22 = vld [vmem:[%s0 + $0x18] sm:$0xff]
    %v23 = vmul.f32 %v19, %v19
    %v24 = vmul.f32 %v20, %v20
    %v25 = vmul.f32 %v21, %v21
    %v26 = vmul.f32 %v22, %v22
    %v27 = vmul.f32 %v19, %v23
    %v28 = vmul.f32 %v20, %v24
    %v29 = vmul.f32 %v21, %v25
    %v30 = vmul.f32 %v22, %v26
    %v31 = vmul.f32 %v27, 0.044715
    %v32 = vmul.f32 %v28, 0.044715
    %v33 = vmul.f32 %v29, 0.044715
    %v34 = vmul.f32 %v30, 0.044715
    %v35 = vadd.f32 %v19, %v31
    %v36 = vadd.f32 %v20, %v32
    %v37 = vadd.f32 %v21, %v33
    %v38 = vadd.f32 %v22, %v34
    %v39 = vmul.f32 %v35, 0.7978846
    %v40 = vmul.f32 %v36, 0.7978846
    %v41 = vmul.f32 %v37, 0.7978846
    %v42 = vmul.f32 %v38, 0.7978846
    %v43 = vtanh.pop %v39
    %v44 = vtanh.pop %v40
    %v45 = vtanh.pop %v41
    %v46 = vtanh.pop %v42
    %v47 = vadd.f32 %v43, 1.0
    %v48 = vadd.f32 %v44, 1.0
    %v49 = vadd.f32 %v45, 1.0
    %v50 = vadd.f32 %v46, 1.0
    %v51 = vmul.f32 %v47, 0.5
    %v52 = vmul.f32 %v48, 0.5
    %v53 = vmul.f32 %v49, 0.5
    %v54 = vmul.f32 %v50, 0.5
    %v55 = vmul.f32 %v19, %v51
    %v56 = vmul.f32 %v20, %v52
    %v57 = vmul.f32 %v21, %v53
    %v58 = vmul.f32 %v22, %v54
    %v59 = vpack.c.bf16 %v56, %v55
    %v60 = vpack.c.bf16 %v58, %v57
    %v61 = vld [vmem:[%s1] sm:$0xf]
    %v62 = vld [vmem:[%s1 + $0x4] sm:$0xf]
    %v65 = vunpack.c.l.b16 %v61
    %v66 = vunpack.c.l.b16 %v62
    %v67 = vpack.c.b16 %v66, %v65
    %vm69 = vcmask 130048
    %v71 = vsel %vm69, %v59, 0
    %v74 = vsel %vm69, %v60, 0
    %76 = vmatprep.subr.bf16.mxu0 0
    %77 = vmatpush1.bf16.msra.mxu0 %v67
    %78 = vmatprep.subr.bf16.mxu0 0
    %79 = vmatpush1.bf16.msra.mxu0 0
    %80 = vmatprep.subr.bf16.mxu0 0
    %81 = vmatpush1.bf16.msra.mxu0 0
    %82 = vmatprep.subr.bf16.mxu0 0
    %83 = vmatpush1.bf16.msra.mxu0 0
    %84 = vmatprep.subr.bf16.mxu0 0
    %85 = vmatpush1.bf16.msra.mxu0 0
    %86 = vmatprep.subr.bf16.mxu0 0
    %87 = vmatpush1.bf16.msra.mxu0 0
    %88 = vmatprep.subr.bf16.mxu0 0
    %89 = vmatpush1.bf16.msra.mxu0 0
    %90 = vmatprep.subr.bf16.mxu0 0
    %91 = vmatpush1.bf16.msra.mxu0 0
    %92 = vmatprep.subr.bf16.mxu0 0
    %93 = vmatpush1.bf16.msra.mxu0 0
    %94 = vmatprep.subr.bf16.mxu0 0
    %95 = vmatpush1.bf16.msra.mxu0 0
    %96 = vmatprep.subr.bf16.mxu0 0
    %97 = vmatpush1.bf16.msra.mxu0 0
    %98 = vmatprep.subr.bf16.mxu0 0
    %99 = vmatpush1.bf16.msra.mxu0 0
    %100 = vmatprep.subr.bf16.mxu0 0
    %101 = vmatpush1.bf16.msra.mxu0 0
    %102 = vmatprep.subr.bf16.mxu0 0
    %103 = vmatpush1.bf16.msra.mxu0 0
    %104 = vmatprep.subr.bf16.mxu0 0
    %105 = vmatpush1.bf16.msra.mxu0 0
    %106 = vmatprep.subr.bf16.mxu0 0
    %107 = vmatpush1.bf16.msra.mxu0 0
    %108 = vmatprep.mubr.bf16.mxu0 0
    %109 = vmatmul.mubr.bf16.gmra.mrb[0].mxu0 %v71
    %v110 = vpop.f32.mrb[0].mxu0
    %v111 = vadd.f32 0.0, %v110
    %v112 = vpop.f32.mrb[0].mxu0
    %v113 = vpop.f32.mrb[0].mxu0
    %v114 = vadd.f32 0.0, %v113
    %v115 = vpop.f32.mrb[0].mxu0
    %116 = vmatprep.mubr.bf16.mxu0 0
    %117 = vmatmul.mubr.bf16.gmra.mrb[0].mxu0 %v74
    %v118 = vpop.f32.mrb[0].mxu0
    %v119 = vadd.f32 0.0, %v118
    %v120 = vpop.f32.mrb[0].mxu0
    %v121 = vpop.f32.mrb[0].mxu0
    %v122 = vadd.f32 0.0, %v121
    %v123 = vpop.f32.mrb[0].mxu0
    %124 = vdwg.mxu0
    %v125 = vld [vmem:[%s2] sm:$0x1]
    %v127 = vlaneseq
    %v128 = vshrl.u32 %v127, 7
    %v129 = vsub.s32 0, %v128
    %v130 = vrot.slane %v125, %v129
    %v132 = vmul.f32 %v111, %v130
    %v133 = vmul.f32 %v114, %v130
    %v134 = vmul.f32 %v119, %v130
    %v135 = vmul.f32 %v122, %v130
    %v136 = vld [vmem:[%s3] sm:$0x1]
    %v138 = vlaneseq
    %v139 = vshrl.u32 %v138, 7
    %v140 = vsub.s32 0, %v139
    %v141 = vrot.slane %v136, %v140
    %v143 = vadd.f32 %v132, %v141
    %v144 = vadd.f32 %v133, %v141
    %v145 = vadd.f32 %v134, %v141
    %v146 = vadd.f32 %v135, %v141
    %v147 = vmul.f32 %v143, %v143
    %v148 = vmul.f32 %v144, %v144
    %v149 = vmul.f32 %v145, %v145
    %v150 = vmul.f32 %v146, %v146
    %v151 = vmul.f32 %v143, %v147
    %v152 = vmul.f32 %v144, %v148
    %v153 = vmul.f32 %v145, %v149
    %v154 = vmul.f32 %v146, %v150
    %v155 = vmul.f32 %v151, 0.044715
    %v156 = vmul.f32 %v152, 0.044715
    %v157 = vmul.f32 %v153, 0.044715
    %v158 = vmul.f32 %v154, 0.044715
    %v159 = vadd.f32 %v143, %v155
    %v160 = vadd.f32 %v144, %v156
    %v161 = vadd.f32 %v145, %v157
    %v162 = vadd.f32 %v146, %v158
    %v163 = vmul.f32 %v159, 0.7978846
    %v164 = vmul.f32 %v160, 0.7978846
    %v165 = vmul.f32 %v161, 0.7978846
    %v166 = vmul.f32 %v162, 0.7978846
    %v167 = vtanh.pop %v163
    %v168 = vtanh.pop %v164
    %v169 = vtanh.pop %v165
    %v170 = vtanh.pop %v166
    %v171 = vadd.f32 %v167, 1.0
    %v172 = vadd.f32 %v168, 1.0
    %v173 = vadd.f32 %v169, 1.0
    %v174 = vadd.f32 %v170, 1.0
    %v175 = vmul.f32 %v171, 0.5
    %v176 = vmul.f32 %v172, 0.5
    %v177 = vmul.f32 %v173, 0.5
    %v178 = vmul.f32 %v174, 0.5
    %v179 = vmul.f32 %v143, %v175
    %v180 = vmul.f32 %v144, %v176
    %v181 = vmul.f32 %v145, %v177
    %v182 = vmul.f32 %v146, %v178
    %v183 = vpack.c.bf16 %v180, %v179
    %v184 = vpack.c.bf16 %v182, %v181
    %v187 = vunpack.c.l.b16 %v183
    %v188 = vunpack.c.h.b16 %v183
    %v189 = vunpack.c.l.b16 %v184
    %v190 = vunpack.c.h.b16 %v184
    %v191 = vpack.c.b16 %v187, %v187
    %v192 = vpack.c.b16 %v188, %v188
    %v193 = vpack.c.b16 %v189, %v189
    %v194 = vpack.c.b16 %v190, %v190
    %vm199 = vcmask 257024
    %200 = vst.msk [vmem:[#allocation2] sm:$0xf] %vm199, %v191
    %201 = vst.msk [vmem:[#allocation2 + $0x4] sm:$0xf] %vm199, %v192
    %202 = vst.msk [vmem:[#allocation2 + $0x8] sm:$0xf] %vm199, %v193
    %203 = vst.msk [vmem:[#allocation2 + $0xc] sm:$0xf] %vm199, %v194
    // Predicated region
    $region18: #{tpu_custom_call.1} parent=1 // pred_check
      _
    $region19: #{tpu_custom_call.1} parent=1 // pred_check_branch
      %205 = sbr.rel (0) target = $region21
    $region20: #{tpu_custom_call.1} parent=1 // pred_region
      %s207 = ssub.s32 256, 256
      %208 = vsyncadd [#allocation3], %s207
      %s209 = sshll.u32 [#allocation2], 4
      %s210 = int_to_ptr.vmem [resolvable:$true] %s209
      %215 = dma.vmem_to_hbm [thread:$0]  %s210, 256, %s4, [#allocation3], 64, 64, 4
    $region21: #{tpu_custom_call.1} parent=1 // pred_fallthru
      _
    // Predicated region
    $region22: #{tpu_custom_call.1} parent=1 // pred_check
      _
    $region23: #{tpu_custom_call.1} parent=1 // pred_check_branch
      %217 = sbr.rel (0) target = $region25
    $region24: #{tpu_custom_call.1} parent=1 // pred_region
      %218 = dma.done [#allocation3], 256
    $region25: #{tpu_custom_call.1} parent=1 // pred_fallthru
      _
    %219 = vsyncpa [#allocation3], 1

</llo_original>
